<compile_context>
chip_gen: v7x
topology: tpu7x:2x2x1
jax: 0.10.0
libtpu: 0.0.40
codegen_flags: <defaults>
</compile_context>

<pallas_src>
import jax
import jax.numpy as jnp
from jax.experimental import pallas as pl
from jax.experimental.pallas import tpu as pltpu


def _round_up(n, m):
    return ((n + m - 1) // m) * m


_TILE_CANDIDATES = (1024, 768, 512, 384, 256, 128, 64, 32, 16, 8)


def _pick_tiling(B, max_tile):
    """Choose (tile_rows, num_tiles, padded_batch) for the 1-D batch grid."""
    max_tile = max(8, (max_tile // 8) * 8)          # sublane-aligned cap
    if B % 8 == 0:
        if B <= max_tile:
            # Whole batch in one tile, unless it splits into >= 2 big tiles
            # (keeps both v7x TensorCores busy through the "parallel" axis).
            for tb in _TILE_CANDIDATES:
                if 128 <= tb <= max_tile and tb < B and B % tb == 0:
                    return tb, B // tb, B
            return B, 1, B
        for tb in _TILE_CANDIDATES:
            if 128 <= tb <= max_tile and B % tb == 0:
                return tb, B // tb, B
    # Ragged / awkward batch: fall back to a minimal pad up to the tile.
    tb = min(max_tile, _round_up(B, 8))
    nb = -(-B // tb)
    return tb, nb, nb * tb


def critic_kernel(x_ref, c_ref,
                  w1_ref, b1_ref,
                  w2_ref, b2_ref,
                  w3_ref, b3_ref,
                  w4_ref, b4_ref,
                  out_ref, xc_ref):
    """Fused 4-layer MLP on one batch tile. Weights are resident VMEM blocks."""
    wdt = w1_ref.dtype                      # bf16 matmul-weight dtype
    dx = x_ref.shape[1]
    dc = c_ref.shape[1]

    # fc1 with fused concat: assemble [x | cond] in a VMEM scratch (lane
    # placement only, no HBM round trip), then a single MXU dot against the
    # stacked weight (one MXU pass instead of two K-split passes).
    xc_ref[:, :dx] = x_ref[...]
    xc_ref[:, dx:dx + dc] = c_ref[...]
    h = jnp.dot(xc_ref[...].astype(wdt), w1_ref[...],
                preferred_element_type=jnp.float32)
    h = jnp.maximum(h + b1_ref[...], 0.0).astype(wdt)   # bf16 inter-layer act

    # fc2
    h = jnp.dot(h, w2_ref[...], preferred_element_type=jnp.float32)
    h = jnp.maximum(h + b2_ref[...], 0.0).astype(wdt)

    # fc3
    h = jnp.dot(h, w3_ref[...], preferred_element_type=jnp.float32)
    h = jnp.maximum(h + b3_ref[...], 0.0)                # f32, feeds VPU only

    # fc4 (128 -> 1): VPU broadcast-mul + lane reduction instead of an N=1
    # MXU dot; store the per-tile result lane-dense as a (1, 1, tb) row.
    o = jnp.sum(h * w4_ref[...], axis=-1)                # (tb,)
    out_ref[...] = o.reshape(1, 1, -1) + b4_ref[...]


def critic_forward(x, condition, params, *, max_batch_tile=512):
    """Batch-tiled fused MLP. x: [B, input_dim], condition: [B, condition_dim]."""
    (w1, b1, w2, b2, w3, b3, w4, b4) = params
    B, input_dim = x.shape
    condition_dim = condition.shape[1]
    k1 = input_dim + condition_dim

    tb, nb, Bp = _pick_tiling(B, max_batch_tile)
    if Bp != B:
        # TODO(synk): rare ragged-batch fallback re-reads x/cond once in HBM;
        # common (tile-divisible) batches take the no-pad path above.
        x = jnp.pad(x, ((0, Bp - B), (0, 0)))
        condition = jnp.pad(condition, ((0, Bp - B), (0, 0)))

    row = lambda i: (i, 0)      # batch-tiled operands
    whole = lambda i: (0, 0)    # resident weights / biases

    in_specs = [
        pl.BlockSpec((tb, input_dim), row),
        pl.BlockSpec((tb, condition_dim), row),
        pl.BlockSpec(w1.shape, whole),
        pl.BlockSpec(b1.shape, whole),
        pl.BlockSpec(w2.shape, whole),
        pl.BlockSpec(b2.shape, whole),
        pl.BlockSpec(w3.shape, whole),
        pl.BlockSpec(b3.shape, whole),
        pl.BlockSpec(w4.shape, whole),
        pl.BlockSpec(b4.shape, whole),
    ]
    out_specs = pl.BlockSpec((1, 1, tb), lambda i: (i, 0, 0))   # lane-dense

    hidden = (512, 256, 128)
    flops = 2 * Bp * (k1 * hidden[0] + hidden[0] * hidden[1]
                      + hidden[1] * hidden[2] + hidden[2])
    param_bytes = sum(int(a.size) * a.dtype.itemsize
                      for a in (w1, b1, w2, b2, w3, b3, w4, b4))
    bytes_accessed = param_bytes + Bp * (k1 + 1) * 4

    out = pl.pallas_call(
        critic_kernel,
        out_shape=jax.ShapeDtypeStruct((nb, 1, tb), jnp.float32),
        grid_spec=pltpu.PrefetchScalarGridSpec(
            num_scalar_prefetch=0,
            grid=(nb,),
            in_specs=in_specs,
            out_specs=out_specs,
            scratch_shapes=[pltpu.VMEM((tb, k1), jnp.float32)],
        ),
        compiler_params=pltpu.CompilerParams(
            dimension_semantics=("parallel",)),
        cost_estimate=pl.CostEstimate(
            flops=flops, transcendentals=0, bytes_accessed=bytes_accessed),
    )(x, condition, w1, b1, w2, b2, w3, b3, w4, b4)
    return out.reshape(-1, 1)[:B]


def init_params(key, input_dim, condition_dim):
    """f32 master params, nn.Linear-equivalent, stored [in, out].

    fc4's weight is stored as a row vector [1, 128]; biases are [1, out]
    ([1, 1] for fc4).
    """
    def linear(k, fan_in, fan_out):
        kw, kb = jax.random.split(k)
        bound = 1.0 / jnp.sqrt(fan_in)
        w = jax.random.uniform(kw, (fan_in, fan_out), jnp.float32, -bound, bound)
        b = jax.random.uniform(kb, (1, fan_out), jnp.float32, -bound, bound)
        return w, b

    k1, k2, k3, k4 = jax.random.split(key, 4)
    w1, b1 = linear(k1, input_dim + condition_dim, 512)
    w2, b2 = linear(k2, 512, 256)
    w3, b3 = linear(k3, 256, 128)
    w4, b4 = linear(k4, 128, 1)
    return (w1, b1, w2, b2, w3, b3, w4.T, b4)


def cast_for_kernel(params_f32, weights_dtype=jnp.bfloat16):
    """bf16 matmul weights (MXU-native on every generation, halved DMA); the
    fc4 row weight and all biases stay f32 (pure VPU work)."""
    (w1, b1, w2, b2, w3, b3, w4, b4) = params_f32
    c = lambda w: w.astype(weights_dtype)
    return (c(w1), b1, c(w2), b2, c(w3), b3, w4, b4)


def critic_reference_f32(x, condition, params_f32):
    """Plain-JAX full-f32 reference with the original PyTorch semantics."""
    (w1, b1, w2, b2, w3, b3, w4, b4) = params_f32
    h = jnp.concatenate([x, condition], axis=1)
    h = jnp.maximum(h @ w1 + b1, 0.0)
    h = jnp.maximum(h @ w2 + b2, 0.0)
    h = jnp.maximum(h @ w3 + b3, 0.0)
    return h @ w4.T + b4


def critic_reference_kernel_math(x, condition, kparams):
    """Plain-JAX reference mirroring the kernel's exact dtype path."""
    (w1, b1, w2, b2, w3, b3, w4, b4) = kparams
    wdt = w1.dtype
    xc = jnp.concatenate([x, condition], axis=1).astype(wdt)
    h = jnp.dot(xc, w1, preferred_element_type=jnp.float32)
    h = jnp.maximum(h + b1, 0.0).astype(wdt)
    h = jnp.dot(h, w2, preferred_element_type=jnp.float32)
    h = jnp.maximum(h + b2, 0.0).astype(wdt)
    h = jnp.dot(h, w3, preferred_element_type=jnp.float32)
    h = jnp.maximum(h + b3, 0.0)
    return jnp.sum(h * w4, axis=-1, keepdims=True) + b4


if __name__ == "__main__":
    batch, input_dim, condition_dim = 8, 16, 8

    key = jax.random.PRNGKey(0)
    kx, kc, kp = jax.random.split(key, 3)
    x = jax.random.normal(kx, (batch, input_dim), jnp.float32)
    condition = jax.random.normal(kc, (batch, condition_dim), jnp.float32)

    params_f32 = init_params(kp, input_dim, condition_dim)
    params = cast_for_kernel(params_f32)  # bf16 matmul weights

    out = jax.block_until_ready(critic_forward(x, condition, params))
    assert out.shape == (batch, 1), out.shape

    ref_exact = critic_reference_kernel_math(x, condition, params)
    ref_f32 = critic_reference_f32(x, condition, params_f32)
    assert jnp.allclose(out, ref_exact, atol=2e-3, rtol=2e-3), (
        f"mirror mismatch: max abs diff {jnp.max(jnp.abs(out - ref_exact))}")
    # bf16 weights/activations are an intentional precision change vs f32 torch.
    assert jnp.allclose(out, ref_f32, atol=5e-2, rtol=5e-2), (
        f"f32 mismatch: max abs diff {jnp.max(jnp.abs(out - ref_f32))}")

    # Multi-tile "parallel" grid path (no pad): B=1024 -> tb=512, nb=2.
    kx2, kc2 = jax.random.split(jax.random.PRNGKey(1))
    B2 = 1024
    x2 = jax.random.normal(kx2, (B2, input_dim), jnp.float32)
    c2 = jax.random.normal(kc2, (B2, condition_dim), jnp.float32)
    out2 = jax.block_until_ready(critic_forward(x2, c2, params))
    ref2 = critic_reference_kernel_math(x2, c2, params)
    assert out2.shape == (B2, 1), out2.shape
    assert jnp.allclose(out2, ref2, atol=2e-3, rtol=2e-3), (
        f"multi-tile mismatch: max abs diff {jnp.max(jnp.abs(out2 - ref2))}")

    # Ragged batch (minimal pad fallback path): B=300.
    kx3, kc3 = jax.random.split(jax.random.PRNGKey(2))
    B3 = 300
    x3 = jax.random.normal(kx3, (B3, input_dim), jnp.float32)
    c3 = jax.random.normal(kc3, (B3, condition_dim), jnp.float32)
    out3 = jax.block_until_ready(critic_forward(x3, c3, params))
    ref3 = critic_reference_kernel_math(x3, c3, params)
    assert out3.shape == (B3, 1), out3.shape
    assert jnp.allclose(out3, ref3, atol=2e-3, rtol=2e-3), (
        f"ragged mismatch: max abs diff {jnp.max(jnp.abs(out3 - ref3))}")

    print("KERNEL_OK")
</pallas_src>

<mosaic_0001>
module attributes {stable_mosaic.version = 11 : i64} {
  func.func @critic_kernel(%arg0: i32, %arg1: memref<8x16xf32, #tpu.memory_space<vmem>>, %arg2: memref<8x8xf32, #tpu.memory_space<vmem>>, %arg3: memref<24x512xbf16, #tpu.memory_space<vmem>>, %arg4: memref<1x512xf32, #tpu.memory_space<vmem>>, %arg5: memref<512x256xbf16, #tpu.memory_space<vmem>>, %arg6: memref<1x256xf32, #tpu.memory_space<vmem>>, %arg7: memref<256x128xbf16, #tpu.memory_space<vmem>>, %arg8: memref<1x128xf32, #tpu.memory_space<vmem>>, %arg9: memref<1x128xf32, #tpu.memory_space<vmem>>, %arg10: memref<1x1xf32, #tpu.memory_space<vmem>>, %arg11: memref<1x1x8xf32, #tpu.memory_space<vmem>>, %arg12: memref<8x24xf32, #tpu.memory_space<vmem>>) attributes {dimension_semantics = [#tpu.dimension_semantics<parallel>], iteration_bounds = array<i64: 1>, scalar_prefetch = 0 : i64, scratch_operands = 1 : i64, tpu.core_type = #tpu.core_type<tc>, window_params = [{transform_indices = @transform_0, window_bounds = array<i64: 8, 16>}, {transform_indices = @transform_1, window_bounds = array<i64: 8, 8>}, {pipeline_mode = #tpu.pipeline_mode<synchronous>, transform_indices = @transform_2, window_bounds = array<i64: 24, 512>}, {pipeline_mode = #tpu.pipeline_mode<synchronous>, transform_indices = @transform_3, window_bounds = array<i64: 1, 512>}, {pipeline_mode = #tpu.pipeline_mode<synchronous>, transform_indices = @transform_4, window_bounds = array<i64: 512, 256>}, {pipeline_mode = #tpu.pipeline_mode<synchronous>, transform_indices = @transform_5, window_bounds = array<i64: 1, 256>}, {pipeline_mode = #tpu.pipeline_mode<synchronous>, transform_indices = @transform_6, window_bounds = array<i64: 256, 128>}, {pipeline_mode = #tpu.pipeline_mode<synchronous>, transform_indices = @transform_7, window_bounds = array<i64: 1, 128>}, {pipeline_mode = #tpu.pipeline_mode<synchronous>, transform_indices = @transform_8, window_bounds = array<i64: 1, 128>}, {pipeline_mode = #tpu.pipeline_mode<synchronous>, transform_indices = @transform_9, window_bounds = array<i64: 1, 1>}, {transform_indices = @transform_10, window_bounds = array<i64: 1, 1, 8>}]} {
    %c0 = arith.constant 0 : index
    %c0_0 = arith.constant 0 : index
    %0 = vector.load %arg1[%c0, %c0_0] : memref<8x16xf32, #tpu.memory_space<vmem>>, vector<8x16xf32>
    %c0_1 = arith.constant 0 : index
    %c0_2 = arith.constant 0 : index
    %1 = vector.load %arg12[%c0_1, %c0_2] : memref<8x24xf32, #tpu.memory_space<vmem>>, vector<8x16xf32>
    tpu.vector_store %arg12[%c0_1, %c0_2], %0 {strides = array<i32>} : memref<8x24xf32, #tpu.memory_space<vmem>>, vector<8x16xf32>,
    %c0_3 = arith.constant 0 : index
    %c0_4 = arith.constant 0 : index
    %2 = vector.load %arg2[%c0_3, %c0_4] : memref<8x8xf32, #tpu.memory_space<vmem>>, vector<8x8xf32>
    %c0_5 = arith.constant 0 : index
    %c16 = arith.constant 16 : index
    %3 = vector.load %arg12[%c0_5, %c16] : memref<8x24xf32, #tpu.memory_space<vmem>>, vector<8x8xf32>
    tpu.vector_store %arg12[%c0_5, %c16], %2 {strides = array<i32>} : memref<8x24xf32, #tpu.memory_space<vmem>>, vector<8x8xf32>,
    %c0_6 = arith.constant 0 : index
    %c0_7 = arith.constant 0 : index
    %4 = vector.load %arg12[%c0_6, %c0_7] : memref<8x24xf32, #tpu.memory_space<vmem>>, vector<8x24xf32>
    %5 = arith.truncf %4 : vector<8x24xf32> to vector<8x24xbf16>
    %c0_8 = arith.constant 0 : index
    %c0_9 = arith.constant 0 : index
    %6 = vector.load %arg3[%c0_8, %c0_9] : memref<24x512xbf16, #tpu.memory_space<vmem>>, vector<24x512xbf16>
    %cst = arith.constant dense<0.000000e+00> : vector<8x512xf32>
    %7 = tpu.matmul %5, %6, %cst {dimension_numbers = #tpu.dot_dimension_numbers<[1], [0], [0], [1], [0, 0, 1, 1], [], []>} : vector<8x24xbf16>, vector<24x512xbf16>, vector<8x512xf32> -> vector<8x512xf32>
    %c0_10 = arith.constant 0 : index
    %c0_11 = arith.constant 0 : index
    %8 = vector.load %arg4[%c0_10, %c0_11] : memref<1x512xf32, #tpu.memory_space<vmem>>, vector<1x512xf32>
    %9 = vector.broadcast %8 : vector<1x512xf32> to vector<8x512xf32>
    %10 = arith.addf %7, %9 : vector<8x512xf32>
    %cst_12 = arith.constant 0.000000e+00 : f32
    %11 = vector.broadcast %cst_12 : f32 to vector<8x512xf32>
    %12 = arith.maximumf %10, %11 : vector<8x512xf32>
    %13 = arith.truncf %12 : vector<8x512xf32> to vector<8x512xbf16>
    %c0_13 = arith.constant 0 : index
    %c0_14 = arith.constant 0 : index
    %14 = vector.load %arg5[%c0_13, %c0_14] : memref<512x256xbf16, #tpu.memory_space<vmem>>, vector<512x256xbf16>
    %cst_15 = arith.constant dense<0.000000e+00> : vector<8x256xf32>
    %15 = tpu.matmul %13, %14, %cst_15 {dimension_numbers = #tpu.dot_dimension_numbers<[1], [0], [0], [1], [0, 0, 1, 1], [], []>} : vector<8x512xbf16>, vector<512x256xbf16>, vector<8x256xf32> -> vector<8x256xf32>
    %c0_16 = arith.constant 0 : index
    %c0_17 = arith.constant 0 : index
    %16 = vector.load %arg6[%c0_16, %c0_17] : memref<1x256xf32, #tpu.memory_space<vmem>>, vector<1x256xf32>
    %17 = vector.broadcast %16 : vector<1x256xf32> to vector<8x256xf32>
    %18 = arith.addf %15, %17 : vector<8x256xf32>
    %cst_18 = arith.constant 0.000000e+00 : f32
    %19 = vector.broadcast %cst_18 : f32 to vector<8x256xf32>
    %20 = arith.maximumf %18, %19 : vector<8x256xf32>
    %21 = arith.truncf %20 : vector<8x256xf32> to vector<8x256xbf16>
    %c0_19 = arith.constant 0 : index
    %c0_20 = arith.constant 0 : index
    %22 = vector.load %arg7[%c0_19, %c0_20] : memref<256x128xbf16, #tpu.memory_space<vmem>>, vector<256x128xbf16>
    %cst_21 = arith.constant dense<0.000000e+00> : vector<8x128xf32>
    %23 = tpu.matmul %21, %22, %cst_21 {dimension_numbers = #tpu.dot_dimension_numbers<[1], [0], [0], [1], [0, 0, 1, 1], [], []>} : vector<8x256xbf16>, vector<256x128xbf16>, vector<8x128xf32> -> vector<8x128xf32>
    %c0_22 = arith.constant 0 : index
    %c0_23 = arith.constant 0 : index
    %24 = vector.load %arg8[%c0_22, %c0_23] : memref<1x128xf32, #tpu.memory_space<vmem>>, vector<1x128xf32>
    %25 = vector.broadcast %24 : vector<1x128xf32> to vector<8x128xf32>
    %26 = arith.addf %23, %25 : vector<8x128xf32>
    %cst_24 = arith.constant 0.000000e+00 : f32
    %27 = vector.broadcast %cst_24 : f32 to vector<8x128xf32>
    %28 = arith.maximumf %26, %27 : vector<8x128xf32>
    %c0_25 = arith.constant 0 : index
    %c0_26 = arith.constant 0 : index
    %29 = vector.load %arg9[%c0_25, %c0_26] : memref<1x128xf32, #tpu.memory_space<vmem>>, vector<1x128xf32>
    %30 = vector.broadcast %29 : vector<1x128xf32> to vector<8x128xf32>
    %31 = arith.mulf %28, %30 : vector<8x128xf32>
    %cst_27 = arith.constant dense<0.000000e+00> : vector<8xf32>
    %32 = vector.multi_reduction <add>, %31, %cst_27 [1] : vector<8x128xf32> to vector<8xf32>
    %33 = vector.shape_cast %32 : vector<8xf32> to vector<1x1x8xf32>
    %c0_28 = arith.constant 0 : index
    %c0_29 = arith.constant 0 : index
    %34 = vector.load %arg10[%c0_28, %c0_29] : memref<1x1xf32, #tpu.memory_space<vmem>>, vector<1x1xf32>
    %35 = vector.shape_cast %34 : vector<1x1xf32> to vector<1x1x1xf32>
    %36 = vector.broadcast %35 : vector<1x1x1xf32> to vector<1x1x8xf32>
    %37 = arith.addf %33, %36 : vector<1x1x8xf32>
    %c0_30 = arith.constant 0 : index
    %c0_31 = arith.constant 0 : index
    %c0_32 = arith.constant 0 : index
    %38 = vector.load %arg11[%c0_30, %c0_31, %c0_32] : memref<1x1x8xf32, #tpu.memory_space<vmem>>, vector<1x1x8xf32>
    tpu.vector_store %arg11[%c0_30, %c0_31, %c0_32], %37 {strides = array<i32>} : memref<1x1x8xf32, #tpu.memory_space<vmem>>, vector<1x1x8xf32>,
    return
  }
  func.func @transform_0(%arg0: i32) -> (i32, i32) {
    %c0_i32 = arith.constant 0 : i32
    %c0_i32_0 = arith.constant 0 : i32
    return %arg0, %c0_i32 : i32, i32
  }
  func.func @transform_1(%arg0: i32) -> (i32, i32) {
    %c0_i32 = arith.constant 0 : i32
    %c0_i32_0 = arith.constant 0 : i32
    return %arg0, %c0_i32 : i32, i32
  }
  func.func @transform_2(%arg0: i32) -> (i32, i32) {
    %c0_i32 = arith.constant 0 : i32
    %c0_i32_0 = arith.constant 0 : i32
    %c0_i32_1 = arith.constant 0 : i32
    return %c0_i32, %c0_i32_0 : i32, i32
  }
  func.func @transform_3(%arg0: i32) -> (i32, i32) {
    %c0_i32 = arith.constant 0 : i32
    %c0_i32_0 = arith.constant 0 : i32
    %c0_i32_1 = arith.constant 0 : i32
    return %c0_i32, %c0_i32_0 : i32, i32
  }
  func.func @transform_4(%arg0: i32) -> (i32, i32) {
    %c0_i32 = arith.constant 0 : i32
    %c0_i32_0 = arith.constant 0 : i32
    %c0_i32_1 = arith.constant 0 : i32
    return %c0_i32, %c0_i32_0 : i32, i32
  }
  func.func @transform_5(%arg0: i32) -> (i32, i32) {
    %c0_i32 = arith.constant 0 : i32
    %c0_i32_0 = arith.constant 0 : i32
    %c0_i32_1 = arith.constant 0 : i32
    return %c0_i32, %c0_i32_0 : i32, i32
  }
  func.func @transform_6(%arg0: i32) -> (i32, i32) {
    %c0_i32 = arith.constant 0 : i32
    %c0_i32_0 = arith.constant 0 : i32
    %c0_i32_1 = arith.constant 0 : i32
    return %c0_i32, %c0_i32_0 : i32, i32
  }
  func.func @transform_7(%arg0: i32) -> (i32, i32) {
    %c0_i32 = arith.constant 0 : i32
    %c0_i32_0 = arith.constant 0 : i32
    %c0_i32_1 = arith.constant 0 : i32
    return %c0_i32, %c0_i32_0 : i32, i32
  }
  func.func @transform_8(%arg0: i32) -> (i32, i32) {
    %c0_i32 = arith.constant 0 : i32
    %c0_i32_0 = arith.constant 0 : i32
    %c0_i32_1 = arith.constant 0 : i32
    return %c0_i32, %c0_i32_0 : i32, i32
  }
  func.func @transform_9(%arg0: i32) -> (i32, i32) {
    %c0_i32 = arith.constant 0 : i32
    %c0_i32_0 = arith.constant 0 : i32
    %c0_i32_1 = arith.constant 0 : i32
    return %c0_i32, %c0_i32_0 : i32, i32
  }
  func.func @transform_10(%arg0: i32) -> (i32, i32, i32) {
    %c0_i32 = arith.constant 0 : i32
    %c0_i32_0 = arith.constant 0 : i32
    %c0_i32_1 = arith.constant 0 : i32
    return %arg0, %c0_i32, %c0_i32_0 : i32, i32, i32
  }
}

</mosaic_0001>

<llo_original>
// kernel: tpu_custom_call.1
$region0: #{tpu_custom_call.1}
  #allocation0 [shape = 'u32[]', space=smem, size = 0x4, offset = 0x4, fixed_abs, tag = 'smem constant byte address 0x4 - core index']
  #allocation1 [shape = 'u32[144,128]{1,0:T(1,128)}', space=vmem, size = 0x12000, scoped, tag = 'internal scratch']
  #allocation2 [shape = 'f32[8,24]{1,0:T(8,128)}', space=vmem, size = 0x1000, scoped, tag = 'scratch operand']
  #allocation3 [shape = 'f32[1,1]{1,0:T(1,128)S(1)}', space=vmem, size = 0x200, scoped, tag = 'scoped memory for tpu_custom_call.1']
  %s0 = inlined_call_operand.hbm [shape: f32[8,16], index: 0, kind: input, shape index: {}]
  %s1 = inlined_call_operand.hbm [shape: f32[8,8], index: 1, kind: input, shape index: {}]
  %s2 = inlined_call_operand.hbm [shape: bf16[24,512], index: 2, kind: input, shape index: {}]
  %s3 = inlined_call_operand.vmem [shape: f32[1,512], index: 3, kind: input, shape index: {}]
  %s4 = inlined_call_operand.hbm [shape: bf16[512,256], index: 4, kind: input, shape index: {}]
  %s5 = inlined_call_operand.vmem [shape: f32[1,256], index: 5, kind: input, shape index: {}]
  %s6 = inlined_call_operand.hbm [shape: bf16[256,128], index: 6, kind: input, shape index: {}]
  %s7 = inlined_call_operand.vmem [shape: f32[1,128], index: 7, kind: input, shape index: {}]
  %s8 = inlined_call_operand.vmem [shape: f32[1,128], index: 8, kind: input, shape index: {}]
  %s9 = inlined_call_operand.<no memory space> [shape: f32[1,1], index: 9, kind: input, shape index: {}]
  %s10 = inlined_call_operand.hbm [shape: f32[1,1,8], index: 10, kind: output, shape index: {}]
  %s11 = sld [smem:[#allocation0]]
  $region70: #{tpu_custom_call.1} parent=0
    _
  %s13 = ssub.s32 1, %s11
  %s14 = scalar_select 0, %s13, %s11
  %v15 = vstv %s9
  %16 = vst [vmem:[#allocation3] sm:$0x1] %v15
  $region1: #{tpu_custom_call.1} parent=0
    #allocation4 [shape = 'u8[4096]{0}', space=vmem, size = 0x1000, scoped, tag = 'input window, operand 0, single buffered']
    #allocation5 [shape = 's32[1]{0}', space=sflag, size = 0x4, scoped, tag = 'scoped memory for tpu_custom_call.1']
    #allocation6 [shape = 's32[1]{0}', space=sflag, size = 0x4, scoped, tag = 'scoped memory for tpu_custom_call.1']
    #allocation7 [shape = 'u8[4096]{0}', space=vmem, size = 0x1000, scoped, tag = 'input window, operand 1, single buffered']
    #allocation8 [shape = 's32[1]{0}', space=sflag, size = 0x4, scoped, tag = 'scoped memory for tpu_custom_call.1']
    #allocation9 [shape = 'u8[24576]{0}', space=vmem, size = 0x6000, scoped, tag = 'input window, operand 2, single buffered']
    #allocation10 [shape = 'u8[262144]{0}', space=vmem, size = 0x40000, scoped, tag = 'input window, operand 4, single buffered']
    #allocation11 [shape = 's32[1]{0}', space=sflag, size = 0x4, scoped, tag = 'scoped memory for tpu_custom_call.1']
    #allocation12 [shape = 'u8[65536]{0}', space=vmem, size = 0x10000, scoped, tag = 'input window, operand 6, single buffered']
    #allocation13 [shape = 'u8[512]{0}', space=vmem, size = 0x400, scoped, tag = 'output window, operand 0, single buffered']
    %17 = vsyncpa [#allocation5], 0
    %18 = vsyncpa [#allocation8], 0
    %19 = vsyncpa [#allocation11], 0
    %20 = vsyncpa [#allocation6], 0
    // Predicated region
    $region2: #{tpu_custom_call.1} parent=1 // pred_check
      _
    $region3: #{tpu_custom_call.1} parent=1 // pred_check_branch
      %22 = sbr.rel (0) target = $region5
    $region4: #{tpu_custom_call.1} parent=1 // pred_region
      %s24 = ssub.s32 128, 128
      %25 = vsyncadd [#allocation5], %s24
      %s27 = sshll.u32 [#allocation4], 4
      %s28 = int_to_ptr.vmem [resolvable:$true] %s27
      %30 = dma.hbm_to_vmem [thread:$0]  %s0, 128, %s28, [#allocation5]
    $region5: #{tpu_custom_call.1} parent=1 // pred_fallthru
      _
    // Predicated region
    $region6: #{tpu_custom_call.1} parent=1 // pred_check
      _
    $region7: #{tpu_custom_call.1} parent=1 // pred_check_branch
      %32 = sbr.rel (0) target = $region9
    $region8: #{tpu_custom_call.1} parent=1 // pred_region
      %s34 = ssub.s32 128, 128
      %35 = vsyncadd [#allocation8], %s34
      %s37 = sshll.u32 [#allocation7], 4
      %s38 = int_to_ptr.vmem [resolvable:$true] %s37
      %40 = dma.hbm_to_vmem [thread:$0]  %s1, 128, %s38, [#allocation8]
    $region9: #{tpu_custom_call.1} parent=1 // pred_fallthru
      _
    // Predicated region
    $region10: #{tpu_custom_call.1} parent=1 // pred_check
      _
    $region11: #{tpu_custom_call.1} parent=1 // pred_check_branch
      %42 = sbr.rel (0) target = $region13
    $region12: #{tpu_custom_call.1} parent=1 // pred_region
      %s44 = ssub.s32 768, 768
      %45 = vsyncadd [#allocation8], %s44
      %s46 = sshll.u32 [#allocation9], 4
      %s47 = int_to_ptr.vmem [resolvable:$true] %s46
      %52 = dma.hbm_to_vmem [thread:$0]  %s2, 768, %s47, [#allocation8], 256, 256, 16
    $region13: #{tpu_custom_call.1} parent=1 // pred_fallthru
      _
    // Predicated region
    $region14: #{tpu_custom_call.1} parent=1 // pred_check
      _
    $region15: #{tpu_custom_call.1} parent=1 // pred_check_branch
      %54 = sbr.rel (0) target = $region17
    $region16: #{tpu_custom_call.1} parent=1 // pred_region
      _
    $region17: #{tpu_custom_call.1} parent=1 // pred_fallthru
      _
    // Predicated region
    $region18: #{tpu_custom_call.1} parent=1 // pred_check
      _
    $region19: #{tpu_custom_call.1} parent=1 // pred_check_branch
      %56 = sbr.rel (0) target = $region21
    $region20: #{tpu_custom_call.1} parent=1 // pred_region
      %s58 = ssub.s32 8192, 8192
      %59 = vsyncadd [#allocation11], %s58
      %s60 = sshll.u32 [#allocation10], 4
      %s61 = int_to_ptr.vmem [resolvable:$true] %s60
      %66 = dma.hbm_to_vmem [thread:$0]  %s4, 8192, %s61, [#allocation11], 128, 128, 8
    $region21: #{tpu_custom_call.1} parent=1 // pred_fallthru
      _
    // Predicated region
    $region22: #{tpu_custom_call.1} parent=1 // pred_check
      _
    $region23: #{tpu_custom_call.1} parent=1 // pred_check_branch
      %68 = sbr.rel (0) target = $region25
    $region24: #{tpu_custom_call.1} parent=1 // pred_region
      _
    $region25: #{tpu_custom_call.1} parent=1 // pred_fallthru
      _
    // Predicated region
    $region26: #{tpu_custom_call.1} parent=1 // pred_check
      _
    $region27: #{tpu_custom_call.1} parent=1 // pred_check_branch
      %70 = sbr.rel (0) target = $region29
    $region28: #{tpu_custom_call.1} parent=1 // pred_region
      %s72 = ssub.s32 2048, 2048
      %73 = vsyncadd [#allocation11], %s72
      %s74 = sshll.u32 [#allocation12], 4
      %s75 = int_to_ptr.vmem [resolvable:$true] %s74
      %80 = dma.hbm_to_vmem [thread:$0]  %s6, 2048, %s75, [#allocation11], 64, 64, 4
    $region29: #{tpu_custom_call.1} parent=1 // pred_fallthru
      _
    // Predicated region
    $region30: #{tpu_custom_call.1} parent=1 // pred_check
      _
    $region31: #{tpu_custom_call.1} parent=1 // pred_check_branch
      %82 = sbr.rel (0) target = $region33
    $region32: #{tpu_custom_call.1} parent=1 // pred_region
      _
    $region33: #{tpu_custom_call.1} parent=1 // pred_fallthru
      _
    // Predicated region
    $region34: #{tpu_custom_call.1} parent=1 // pred_check
      _
    $region35: #{tpu_custom_call.1} parent=1 // pred_check_branch
      %84 = sbr.rel (0) target = $region37
    $region36: #{tpu_custom_call.1} parent=1 // pred_region
      _
    $region37: #{tpu_custom_call.1} parent=1 // pred_fallthru
      _
    // Predicated region
    $region38: #{tpu_custom_call.1} parent=1 // pred_check
      _
    $region39: #{tpu_custom_call.1} parent=1 // pred_check_branch
      %86 = sbr.rel (0) target = $region41
    $region40: #{tpu_custom_call.1} parent=1 // pred_region
      _
    $region41: #{tpu_custom_call.1} parent=1 // pred_fallthru
      _
    // Predicated region
    $region42: #{tpu_custom_call.1} parent=1 // pred_check
      _
    $region43: #{tpu_custom_call.1} parent=1 // pred_check_branch
      %88 = sbr.rel (0) target = $region45
    $region44: #{tpu_custom_call.1} parent=1 // pred_region
      %89 = dma.done [#allocation5], 128
    $region45: #{tpu_custom_call.1} parent=1 // pred_fallthru
      _
    // Predicated region
    $region46: #{tpu_custom_call.1} parent=1 // pred_check
      _
    $region47: #{tpu_custom_call.1} parent=1 // pred_check_branch
      %91 = sbr.rel (0) target = $region49
    $region48: #{tpu_custom_call.1} parent=1 // pred_region
      %92 = dma.done [#allocation8], 128
    $region49: #{tpu_custom_call.1} parent=1 // pred_fallthru
      _
    // Predicated region
    $region50: #{tpu_custom_call.1} parent=1 // pred_check
      _
    $region51: #{tpu_custom_call.1} parent=1 // pred_check_branch
      %94 = sbr.rel (0) target = $region53
    $region52: #{tpu_custom_call.1} parent=1 // pred_region
      %95 = dma.done [#allocation8], 768
    $region53: #{tpu_custom_call.1} parent=1 // pred_fallthru
      _
    // Predicated region
    $region54: #{tpu_custom_call.1} parent=1 // pred_check
      _
    $region55: #{tpu_custom_call.1} parent=1 // pred_check_branch
      %97 = sbr.rel (0) target = $region57
    $region56: #{tpu_custom_call.1} parent=1 // pred_region
      %98 = dma.done [#allocation11], 8192
    $region57: #{tpu_custom_call.1} parent=1 // pred_fallthru
      _
    // Predicated region
    $region58: #{tpu_custom_call.1} parent=1 // pred_check
      _
    $region59: #{tpu_custom_call.1} parent=1 // pred_check_branch
      %100 = sbr.rel (0) target = $region61
    $region60: #{tpu_custom_call.1} parent=1 // pred_region
      %101 = dma.done [#allocation11], 2048
    $region61: #{tpu_custom_call.1} parent=1 // pred_fallthru
      _
    %v103 = vld [vmem:[#allocation4] sm:$0xff]
    %vm104 = vcmask 130048
    %105 = vst.msk [vmem:[#allocation2] sm:$0xff] %vm104, %v103
    %v106 = vld [vmem:[#allocation7] sm:$0xff]
    %108 = vrot.lane.b32.xlu0 %v106, 16
    %v109 = vpop.permute.xlu0 %108
    %vm111 = vcmask 195712
    %112 = vst.msk [vmem:[#allocation2] sm:$0xff] %vm111, %v109
    %v113 = vld [vmem:[#allocation2] sm:$0xff]
    %v114 = vpack.c.bf16 %v113, %v113
    %v115 = vld [vmem:[#allocation9] sm:$0xff]
    %v116 = vld [vmem:[#allocation9 + $0x8] sm:$0xff]
    %v117 = vld [vmem:[#allocation9 + $0x10] sm:$0xff]
    %v118 = vld [vmem:[#allocation9 + $0x18] sm:$0xff]
    %v119 = vld [vmem:[#allocation9 + $0x20] sm:$0xff]
    %v120 = vld [vmem:[#allocation9 + $0x28] sm:$0xff]
    %v121 = vld [vmem:[%s3] sm:$0xf]
    %v123 = vlaneseq
    %v124 = vshrl.u32 %v123, 7
    %v125 = vsub.s32 0, %v124
    %v126 = vrot.slane %v121, %v125
    %v127 = vlaneseq
    %v128 = vshrl.u32 %v127, 7
    %v129 = vsub.s32 1, %v128
    %v130 = vrot.slane %v121, %v129
    %v131 = vlaneseq
    %v132 = vshrl.u32 %v131, 7
    %v133 = vsub.s32 2, %v132
    %v134 = vrot.slane %v121, %v133
    %v135 = vlaneseq
    %v136 = vshrl.u32 %v135, 7
    %v137 = vsub.s32 3, %v136
    %v138 = vrot.slane %v121, %v137
    %v149 = vunpack.c.l.b16 %v115
    %v150 = vunpack.c.h.b16 %v115
    %v151 = vunpack.c.l.b16 %v116
    %v152 = vunpack.c.h.b16 %v116
    %v153 = vunpack.c.l.b16 %v117
    %v154 = vunpack.c.h.b16 %v117
    %v155 = vunpack.c.l.b16 %v118
    %v156 = vunpack.c.h.b16 %v118
    %v157 = vunpack.c.l.b16 %v119
    %v158 = vunpack.c.h.b16 %v119
    %v159 = vunpack.c.l.b16 %v120
    %v160 = vunpack.c.h.b16 %v120
    %v161 = vpack.c.b16 %v153, %v149
    %v162 = vpack.c.b16 %v154, %v150
    %v163 = vpack.c.b16 %v155, %v151
    %v164 = vpack.c.b16 %v156, %v152
    %v165 = vpack.c.b16 %v157, %v157
    %v166 = vpack.c.b16 %v158, %v158
    %v167 = vpack.c.b16 %v159, %v159
    %v168 = vpack.c.b16 %v160, %v160
    %vm173 = vcmask 195584
    %v175 = vsel %vm173, %v114, 0
    %vm177 = vcmask 1043456
    %v179 = vsel %vm177, %v165, 0
    %v182 = vsel %vm177, %v166, 0
    %v185 = vsel %vm177, %v167, 0
    %v188 = vsel %vm177, %v168, 0
    %190 = vmatprep.subr.bf16.mxu0 %v162
    %191 = vmatpush1.bf16.msra.mxu0 %v161
    %192 = vmatprep.subr.bf16.mxu0 %v182
    %193 = vmatpush1.bf16.msra.mxu0 %v179
    %194 = vmatprep.subr.bf16.mxu0 0
    %195 = vmatpush1.bf16.msra.mxu0 0
    %196 = vmatprep.subr.bf16.mxu0 0
    %197 = vmatpush1.bf16.msra.mxu0 0
    %198 = vmatprep.subr.bf16.mxu0 0
    %199 = vmatpush1.bf16.msra.mxu0 0
    %200 = vmatprep.subr.bf16.mxu0 0
    %201 = vmatpush1.bf16.msra.mxu0 0
    %202 = vmatprep.subr.bf16.mxu0 0
    %203 = vmatpush1.bf16.msra.mxu0 0
    %204 = vmatprep.subr.bf16.mxu0 0
    %205 = vmatpush1.bf16.msra.mxu0 0
    %206 = vmatprep.subr.bf16.mxu0 0
    %207 = vmatpush1.bf16.msra.mxu0 0
    %208 = vmatprep.subr.bf16.mxu0 0
    %209 = vmatpush1.bf16.msra.mxu0 0
    %210 = vmatprep.subr.bf16.mxu0 0
    %211 = vmatpush1.bf16.msra.mxu0 0
    %212 = vmatprep.subr.bf16.mxu0 0
    %213 = vmatpush1.bf16.msra.mxu0 0
    %214 = vmatprep.subr.bf16.mxu0 0
    %215 = vmatpush1.bf16.msra.mxu0 0
    %216 = vmatprep.subr.bf16.mxu0 0
    %217 = vmatpush1.bf16.msra.mxu0 0
    %218 = vmatprep.subr.bf16.mxu0 0
    %219 = vmatpush1.bf16.msra.mxu0 0
    %220 = vmatprep.subr.bf16.mxu0 0
    %221 = vmatpush1.bf16.msra.mxu0 0
    %222 = vmatprep.mubr.bf16.mxu0 0
    %223 = vmatmul.mubr.bf16.gmra.mrb[0].mxu0 %v175
    %v224 = vpop.f32.mrb[0].mxu0
    %v225 = vadd.f32 %v126, %v224
    %v226 = vpop.f32.mrb[0].mxu0
    %v227 = vadd.f32 %v130, %v226
    %v228 = vpop.f32.mrb[0].mxu0
    %v229 = vpop.f32.mrb[0].mxu0
    %230 = vdwg.mxu0
    %231 = vmatprep.subr.bf16.mxu0 %v164
    %232 = vmatpush1.bf16.msra.mxu0 %v163
    %233 = vmatprep.subr.bf16.mxu0 %v188
    %234 = vmatpush1.bf16.msra.mxu0 %v185
    %235 = vmatprep.subr.bf16.mxu0 0
    %236 = vmatpush1.bf16.msra.mxu0 0
    %237 = vmatprep.subr.bf16.mxu0 0
    %238 = vmatpush1.bf16.msra.mxu0 0
    %239 = vmatprep.subr.bf16.mxu0 0
    %240 = vmatpush1.bf16.msra.mxu0 0
    %241 = vmatprep.subr.bf16.mxu0 0
    %242 = vmatpush1.bf16.msra.mxu0 0
    %243 = vmatprep.subr.bf16.mxu0 0
    %244 = vmatpush1.bf16.msra.mxu0 0
    %245 = vmatprep.subr.bf16.mxu0 0
    %246 = vmatpush1.bf16.msra.mxu0 0
    %247 = vmatprep.subr.bf16.mxu0 0
    %248 = vmatpush1.bf16.msra.mxu0 0
    %249 = vmatprep.subr.bf16.mxu0 0
    %250 = vmatpush1.bf16.msra.mxu0 0
    %251 = vmatprep.subr.bf16.mxu0 0
    %252 = vmatpush1.bf16.msra.mxu0 0
    %253 = vmatprep.subr.bf16.mxu0 0
    %254 = vmatpush1.bf16.msra.mxu0 0
    %255 = vmatprep.subr.bf16.mxu0 0
    %256 = vmatpush1.bf16.msra.mxu0 0
    %257 = vmatprep.subr.bf16.mxu0 0
    %258 = vmatpush1.bf16.msra.mxu0 0
    %259 = vmatprep.subr.bf16.mxu0 0
    %260 = vmatpush1.bf16.msra.mxu0 0
    %261 = vmatprep.subr.bf16.mxu0 0
    %262 = vmatpush1.bf16.msra.mxu0 0
    %263 = vmatprep.mubr.bf16.mxu0 0
    %264 = vmatmul.mubr.bf16.gmra.mrb[0].mxu0 %v175
    %v265 = vpop.f32.mrb[0].mxu0
    %v266 = vadd.f32 %v134, %v265
    %v267 = vpop.f32.mrb[0].mxu0
    %v268 = vadd.f32 %v138, %v267
    %v269 = vpop.f32.mrb[0].mxu0
    %v270 = vpop.f32.mrb[0].mxu0
    %271 = vdwg.mxu0
    %v272 = vmax.f32 %v225, 0.0
    %v273 = vmax.f32 %v227, 0.0
    %v274 = vmax.f32 %v266, 0.0
    %v275 = vmax.f32 %v268, 0.0
    %v276 = vpack.c.bf16 %v272, %v272
    %v277 = vpack.c.bf16 %v273, %v273
    %v278 = vpack.c.bf16 %v274, %v274
    %v279 = vpack.c.bf16 %v275, %v275
    %v280 = vld [vmem:[#allocation10] sm:$0xff]
    %v281 = vld [vmem:[#allocation10 + $0x8] sm:$0xff]
    %v282 = vld [vmem:[#allocation10 + $0x10] sm:$0xff]
    %v283 = vld [vmem:[#allocation10 + $0x18] sm:$0xff]
    %v284 = vld [vmem:[#allocation10 + $0x20] sm:$0xff]
    %v285 = vld [vmem:[#allocation10 + $0x28] sm:$0xff]
    %v286 = vld [vmem:[#allocation10 + $0x30] sm:$0xff]
    %v287 = vld [vmem:[#allocation10 + $0x38] sm:$0xff]
    %v288 = vld [vmem:[#allocation10 + $0x40] sm:$0xff]
    %v289 = vld [vmem:[#allocation10 + $0x48] sm:$0xff]
    %v290 = vld [vmem:[#allocation10 + $0x50] sm:$0xff]
    %v291 = vld [vmem:[#allocation10 + $0x58] sm:$0xff]
    %v292 = vld [vmem:[#allocation10 + $0x60] sm:$0xff]
    %v293 = vld [vmem:[#allocation10 + $0x68] sm:$0xff]
    %v294 = vld [vmem:[#allocation10 + $0x70] sm:$0xff]
    %v295 = vld [vmem:[#allocation10 + $0x78] sm:$0xff]
    %v296 = vld [vmem:[#allocation10 + $0x80] sm:$0xff]
    %v297 = vld [vmem:[#allocation10 + $0x88] sm:$0xff]
    %v298 = vld [vmem:[#allocation10 + $0x90] sm:$0xff]
    %v299 = vld [vmem:[#allocation10 + $0x98] sm:$0xff]
    %v300 = vld [vmem:[#allocation10 + $0xa0] sm:$0xff]
    %v301 = vld [vmem:[#allocation10 + $0xa8] sm:$0xff]
    %v302 = vld [vmem:[#allocation10 + $0xb0] sm:$0xff]
    %v303 = vld [vmem:[#allocation10 + $0xb8] sm:$0xff]
    %v304 = vld [vmem:[#allocation10 + $0xc0] sm:$0xff]
    %v305 = vld [vmem:[#allocation10 + $0xc8] sm:$0xff]
    %v306 = vld [vmem:[#allocation10 + $0xd0] sm:$0xff]
    %v307 = vld [vmem:[#allocation10 + $0xd8] sm:$0xff]
    %v308 = vld [vmem:[#allocation10 + $0xe0] sm:$0xff]
    %v309 = vld [vmem:[#allocation10 + $0xe8] sm:$0xff]
    %v310 = vld [vmem:[#allocation10 + $0xf0] sm:$0xff]
    %v311 = vld [vmem:[#allocation10 + $0xf8] sm:$0xff]
    %v312 = vld [vmem:[#allocation10 + $0x100] sm:$0xff]
    %v313 = vld [vmem:[#allocation10 + $0x108] sm:$0xff]
    %v314 = vld [vmem:[#allocation10 + $0x110] sm:$0xff]
    %v315 = vld [vmem:[#allocation10 + $0x118] sm:$0xff]
    %v316 = vld [vmem:[#allocation10 + $0x120] sm:$0xff]
    %v317 = vld [vmem:[#allocation10 + $0x128] sm:$0xff]
    %v318 = vld [vmem:[#allocation10 + $0x130] sm:$0xff]
    %v319 = vld [vmem:[#allocation10 + $0x138] sm:$0xff]
    %v320 = vld [vmem:[#allocation10 + $0x140] sm:$0xff]
    %v321 = vld [vmem:[#allocation10 + $0x148] sm:$0xff]
    %v322 = vld [vmem:[#allocation10 + $0x150] sm:$0xff]
    %v323 = vld [vmem:[#allocation10 + $0x158] sm:$0xff]
    %v324 = vld [vmem:[#allocation10 + $0x160] sm:$0xff]
    %v325 = vld [vmem:[#allocation10 + $0x168] sm:$0xff]
    %v326 = vld [vmem:[#allocation10 + $0x170] sm:$0xff]
    %v327 = vld [vmem:[#allocation10 + $0x178] sm:$0xff]
    %v328 = vld [vmem:[#allocation10 + $0x180] sm:$0xff]
    %v329 = vld [vmem:[#allocation10 + $0x188] sm:$0xff]
    %v330 = vld [vmem:[#allocation10 + $0x190] sm:$0xff]
    %v331 = vld [vmem:[#allocation10 + $0x198] sm:$0xff]
    %v332 = vld [vmem:[#allocation10 + $0x1a0] sm:$0xff]
    %v333 = vld [vmem:[#allocation10 + $0x1a8] sm:$0xff]
    %v334 = vld [vmem:[#allocation10 + $0x1b0] sm:$0xff]
    %v335 = vld [vmem:[#allocation10 + $0x1b8] sm:$0xff]
    %v336 = vld [vmem:[#allocation10 + $0x1c0] sm:$0xff]
    %v337 = vld [vmem:[#allocation10 + $0x1c8] sm:$0xff]
    %v338 = vld [vmem:[#allocation10 + $0x1d0] sm:$0xff]
    %v339 = vld [vmem:[#allocation10 + $0x1d8] sm:$0xff]
    %v340 = vld [vmem:[#allocation10 + $0x1e0] sm:$0xff]
    %v341 = vld [vmem:[#allocation10 + $0x1e8] sm:$0xff]
    %v342 = vld [vmem:[#allocation10 + $0x1f0] sm:$0xff]
    %v343 = vld [vmem:[#allocation10 + $0x1f8] sm:$0xff]
    %v344 = vld [vmem:[%s5] sm:$0x3]
    %v346 = vlaneseq
    %v347 = vshrl.u32 %v346, 7
    %v348 = vsub.s32 0, %v347
    %v349 = vrot.slane %v344, %v348
    %v350 = vlaneseq
    %v351 = vshrl.u32 %v350, 7
    %v352 = vsub.s32 1, %v351
    %v353 = vrot.slane %v344, %v352
    %v420 = vunpack.c.l.b16 %v280
    %v421 = vunpack.c.h.b16 %v280
    %v422 = vunpack.c.l.b16 %v281
    %v423 = vunpack.c.h.b16 %v281
    %v424 = vunpack.c.l.b16 %v282
    %v425 = vunpack.c.h.b16 %v282
    %v426 = vunpack.c.l.b16 %v283
    %v427 = vunpack.c.h.b16 %v283
    %v428 = vunpack.c.l.b16 %v284
    %v429 = vunpack.c.h.b16 %v284
    %v430 = vunpack.c.l.b16 %v285
    %v431 = vunpack.c.h.b16 %v285
    %v432 = vunpack.c.l.b16 %v286
    %v433 = vunpack.c.h.b16 %v286
    %v434 = vunpack.c.l.b16 %v287
    %v435 = vunpack.c.h.b16 %v287
    %v436 = vunpack.c.l.b16 %v288
    %v437 = vunpack.c.h.b16 %v288
    %v438 = vunpack.c.l.b16 %v289
    %v439 = vunpack.c.h.b16 %v289
    %v440 = vunpack.c.l.b16 %v290
    %v441 = vunpack.c.h.b16 %v290
    %v442 = vunpack.c.l.b16 %v291
    %v443 = vunpack.c.h.b16 %v291
    %v444 = vunpack.c.l.b16 %v292
    %v445 = vunpack.c.h.b16 %v292
    %v446 = vunpack.c.l.b16 %v293
    %v447 = vunpack.c.h.b16 %v293
    %v448 = vunpack.c.l.b16 %v294
    %v449 = vunpack.c.h.b16 %v294
    %v450 = vunpack.c.l.b16 %v295
    %v451 = vunpack.c.h.b16 %v295
    %v452 = vunpack.c.l.b16 %v296
    %v453 = vunpack.c.h.b16 %v296
    %v454 = vunpack.c.l.b16 %v297
    %v455 = vunpack.c.h.b16 %v297
    %v456 = vunpack.c.l.b16 %v298
    %v457 = vunpack.c.h.b16 %v298
    %v458 = vunpack.c.l.b16 %v299
    %v459 = vunpack.c.h.b16 %v299
    %v460 = vunpack.c.l.b16 %v300
    %v461 = vunpack.c.h.b16 %v300
    %v462 = vunpack.c.l.b16 %v301
    %v463 = vunpack.c.h.b16 %v301
    %v464 = vunpack.c.l.b16 %v302
    %v465 = vunpack.c.h.b16 %v302
    %v466 = vunpack.c.l.b16 %v303
    %v467 = vunpack.c.h.b16 %v303
    %v468 = vunpack.c.l.b16 %v304
    %v469 = vunpack.c.h.b16 %v304
    %v470 = vunpack.c.l.b16 %v305
    %v471 = vunpack.c.h.b16 %v305
    %v472 = vunpack.c.l.b16 %v306
    %v473 = vunpack.c.h.b16 %v306
    %v474 = vunpack.c.l.b16 %v307
    %v475 = vunpack.c.h.b16 %v307
    %v476 = vunpack.c.l.b16 %v308
    %v477 = vunpack.c.h.b16 %v308
    %v478 = vunpack.c.l.b16 %v309
    %v479 = vunpack.c.h.b16 %v309
    %v480 = vunpack.c.l.b16 %v310
    %v481 = vunpack.c.h.b16 %v310
    %v482 = vunpack.c.l.b16 %v311
    %v483 = vunpack.c.h.b16 %v311
    %v484 = vunpack.c.l.b16 %v312
    %v485 = vunpack.c.h.b16 %v312
    %v486 = vunpack.c.l.b16 %v313
    %v487 = vunpack.c.h.b16 %v313
    %v488 = vunpack.c.l.b16 %v314
    %v489 = vunpack.c.h.b16 %v314
    %v490 = vunpack.c.l.b16 %v315
    %v491 = vunpack.c.h.b16 %v315
    %v492 = vunpack.c.l.b16 %v316
    %v493 = vunpack.c.h.b16 %v316
    %v494 = vunpack.c.l.b16 %v317
    %v495 = vunpack.c.h.b16 %v317
    %v496 = vunpack.c.l.b16 %v318
    %v497 = vunpack.c.h.b16 %v318
    %v498 = vunpack.c.l.b16 %v319
    %v499 = vunpack.c.h.b16 %v319
    %v500 = vunpack.c.l.b16 %v320
    %v501 = vunpack.c.h.b16 %v320
    %v502 = vunpack.c.l.b16 %v321
    %v503 = vunpack.c.h.b16 %v321
    %v504 = vunpack.c.l.b16 %v322
    %v505 = vunpack.c.h.b16 %v322
    %v506 = vunpack.c.l.b16 %v323
    %v507 = vunpack.c.h.b16 %v323
    %v508 = vunpack.c.l.b16 %v324
    %v509 = vunpack.c.h.b16 %v324
    %v510 = vunpack.c.l.b16 %v325
    %v511 = vunpack.c.h.b16 %v325
    %v512 = vunpack.c.l.b16 %v326
    %v513 = vunpack.c.h.b16 %v326
    %v514 = vunpack.c.l.b16 %v327
    %v515 = vunpack.c.h.b16 %v327
    %v516 = vunpack.c.l.b16 %v328
    %v517 = vunpack.c.h.b16 %v328
    %v518 = vunpack.c.l.b16 %v329
    %v519 = vunpack.c.h.b16 %v329
    %v520 = vunpack.c.l.b16 %v330
    %v521 = vunpack.c.h.b16 %v330
    %v522 = vunpack.c.l.b16 %v331
    %v523 = vunpack.c.h.b16 %v331
    %v524 = vunpack.c.l.b16 %v332
    %v525 = vunpack.c.h.b16 %v332
    %v526 = vunpack.c.l.b16 %v333
    %v527 = vunpack.c.h.b16 %v333
    %v528 = vunpack.c.l.b16 %v334
    %v529 = vunpack.c.h.b16 %v334
    %v530 = vunpack.c.l.b16 %v335
    %v531 = vunpack.c.h.b16 %v335
    %v532 = vunpack.c.l.b16 %v336
    %v533 = vunpack.c.h.b16 %v336
    %v534 = vunpack.c.l.b16 %v337
    %v535 = vunpack.c.h.b16 %v337
    %v536 = vunpack.c.l.b16 %v338
    %v537 = vunpack.c.h.b16 %v338
    %v538 = vunpack.c.l.b16 %v339
    %v539 = vunpack.c.h.b16 %v339
    %v540 = vunpack.c.l.b16 %v340
    %v541 = vunpack.c.h.b16 %v340
    %v542 = vunpack.c.l.b16 %v341
    %v543 = vunpack.c.h.b16 %v341
    %v544 = vunpack.c.l.b16 %v342
    %v545 = vunpack.c.h.b16 %v342
    %v546 = vunpack.c.l.b16 %v343
    %v547 = vunpack.c.h.b16 %v343
    %v548 = vpack.c.b16 %v422, %v420
    %v549 = vpack.c.b16 %v423, %v421
    %v550 = vpack.c.b16 %v426, %v424
    %v551 = vpack.c.b16 %v427, %v425
    %v552 = vpack.c.b16 %v430, %v428
    %v553 = vpack.c.b16 %v431, %v429
    %v554 = vpack.c.b16 %v434, %v432
    %v555 = vpack.c.b16 %v435, %v433
    %v556 = vpack.c.b16 %v438, %v436
    %v557 = vpack.c.b16 %v439, %v437
    %v558 = vpack.c.b16 %v442, %v440
    %v559 = vpack.c.b16 %v443, %v441
    %v560 = vpack.c.b16 %v446, %v444
    %v561 = vpack.c.b16 %v447, %v445
    %v562 = vpack.c.b16 %v450, %v448
    %v563 = vpack.c.b16 %v451, %v449
    %v564 = vpack.c.b16 %v454, %v452
    %v565 = vpack.c.b16 %v455, %v453
    %v566 = vpack.c.b16 %v458, %v456
    %v567 = vpack.c.b16 %v459, %v457
    %v568 = vpack.c.b16 %v462, %v460
    %v569 = vpack.c.b16 %v463, %v461
    %v570 = vpack.c.b16 %v466, %v464
    %v571 = vpack.c.b16 %v467, %v465
    %v572 = vpack.c.b16 %v470, %v468
    %v573 = vpack.c.b16 %v471, %v469
    %v574 = vpack.c.b16 %v474, %v472
    %v575 = vpack.c.b16 %v475, %v473
    %v576 = vpack.c.b16 %v478, %v476
    %v577 = vpack.c.b16 %v479, %v477
    %v578 = vpack.c.b16 %v482, %v480
    %v579 = vpack.c.b16 %v483, %v481
    %v580 = vpack.c.b16 %v486, %v484
    %v581 = vpack.c.b16 %v487, %v485
    %v582 = vpack.c.b16 %v490, %v488
    %v583 = vpack.c.b16 %v491, %v489
    %v584 = vpack.c.b16 %v494, %v492
    %v585 = vpack.c.b16 %v495, %v493
    %v586 = vpack.c.b16 %v498, %v496
    %v587 = vpack.c.b16 %v499, %v497
    %v588 = vpack.c.b16 %v502, %v500
    %v589 = vpack.c.b16 %v503, %v501
    %v590 = vpack.c.b16 %v506, %v504
    %v591 = vpack.c.b16 %v507, %v505
    %v592 = vpack.c.b16 %v510, %v508
    %v593 = vpack.c.b16 %v511, %v509
    %v594 = vpack.c.b16 %v514, %v512
    %v595 = vpack.c.b16 %v515, %v513
    %v596 = vpack.c.b16 %v518, %v516
    %v597 = vpack.c.b16 %v519, %v517
    %v598 = vpack.c.b16 %v522, %v520
    %v599 = vpack.c.b16 %v523, %v521
    %v600 = vpack.c.b16 %v526, %v524
    %v601 = vpack.c.b16 %v527, %v525
    %v602 = vpack.c.b16 %v530, %v528
    %v603 = vpack.c.b16 %v531, %v529
    %v604 = vpack.c.b16 %v534, %v532
    %v605 = vpack.c.b16 %v535, %v533
    %v606 = vpack.c.b16 %v538, %v536
    %v607 = vpack.c.b16 %v539, %v537
    %v608 = vpack.c.b16 %v542, %v540
    %v609 = vpack.c.b16 %v543, %v541
    %v610 = vpack.c.b16 %v546, %v544
    %v611 = vpack.c.b16 %v547, %v545
    %676 = vmatprep.subr.bf16.mxu0 %v549
    %677 = vmatpush1.bf16.msra.mxu0 %v548
    %678 = vmatprep.subr.bf16.mxu0 %v551
    %679 = vmatpush1.bf16.msra.mxu0 %v550
    %680 = vmatprep.subr.bf16.mxu0 %v553
    %681 = vmatpush1.bf16.msra.mxu0 %v552
    %682 = vmatprep.subr.bf16.mxu0 %v555
    %683 = vmatpush1.bf16.msra.mxu0 %v554
    %684 = vmatprep.subr.bf16.mxu0 %v557
    %685 = vmatpush1.bf16.msra.mxu0 %v556
    %686 = vmatprep.subr.bf16.mxu0 %v559
    %687 = vmatpush1.bf16.msra.mxu0 %v558
    %688 = vmatprep.subr.bf16.mxu0 %v561
    %689 = vmatpush1.bf16.msra.mxu0 %v560
    %690 = vmatprep.subr.bf16.mxu0 %v563
    %691 = vmatpush1.bf16.msra.mxu0 %v562
    %692 = vmatprep.subr.bf16.mxu0 %v565
    %693 = vmatpush1.bf16.msra.mxu0 %v564
    %694 = vmatprep.subr.bf16.mxu0 %v567
    %695 = vmatpush1.bf16.msra.mxu0 %v566
    %696 = vmatprep.subr.bf16.mxu0 %v569
    %697 = vmatpush1.bf16.msra.mxu0 %v568
    %698 = vmatprep.subr.bf16.mxu0 %v571
    %699 = vmatpush1.bf16.msra.mxu0 %v570
    %700 = vmatprep.subr.bf16.mxu0 %v573
    %701 = vmatpush1.bf16.msra.mxu0 %v572
    %702 = vmatprep.subr.bf16.mxu0 %v575
    %703 = vmatpush1.bf16.msra.mxu0 %v574
    %704 = vmatprep.subr.bf16.mxu0 %v577
    %705 = vmatpush1.bf16.msra.mxu0 %v576
    %706 = vmatprep.subr.bf16.mxu0 %v579
    %707 = vmatpush1.bf16.msra.mxu0 %v578
    %708 = vmatprep.mubr.bf16.mxu0 %v277
    %709 = vmatmul.mubr.bf16.gmra.mrb[0].mxu0 %v276
    %v710 = vpop.f32.mrb[0].mxu0
    %v711 = vadd.f32 %v349, %v710
    %v712 = vpop.f32.mrb[0].mxu0
    %v713 = vadd.f32 %v353, %v712
    %v714 = vpop.f32.mrb[0].mxu0
    %v715 = vpop.f32.mrb[0].mxu0
    %716 = vdwg.mxu0
    %717 = vmatprep.subr.bf16.mxu0 %v581
    %718 = vmatpush1.bf16.msra.mxu0 %v580
    %719 = vmatprep.subr.bf16.mxu0 %v583
    %720 = vmatpush1.bf16.msra.mxu0 %v582
    %721 = vmatprep.subr.bf16.mxu0 %v585
    %722 = vmatpush1.bf16.msra.mxu0 %v584
    %723 = vmatprep.subr.bf16.mxu0 %v587
    %724 = vmatpush1.bf16.msra.mxu0 %v586
    %725 = vmatprep.subr.bf16.mxu0 %v589
    %726 = vmatpush1.bf16.msra.mxu0 %v588
    %727 = vmatprep.subr.bf16.mxu0 %v591
    %728 = vmatpush1.bf16.msra.mxu0 %v590
    %729 = vmatprep.subr.bf16.mxu0 %v593
    %730 = vmatpush1.bf16.msra.mxu0 %v592
    %731 = vmatprep.subr.bf16.mxu0 %v595
    %732 = vmatpush1.bf16.msra.mxu0 %v594
    %733 = vmatprep.subr.bf16.mxu0 %v597
    %734 = vmatpush1.bf16.msra.mxu0 %v596
    %735 = vmatprep.subr.bf16.mxu0 %v599
    %736 = vmatpush1.bf16.msra.mxu0 %v598
    %737 = vmatprep.subr.bf16.mxu0 %v601
    %738 = vmatpush1.bf16.msra.mxu0 %v600
    %739 = vmatprep.subr.bf16.mxu0 %v603
    %740 = vmatpush1.bf16.msra.mxu0 %v602
    %741 = vmatprep.subr.bf16.mxu0 %v605
    %742 = vmatpush1.bf16.msra.mxu0 %v604
    %743 = vmatprep.subr.bf16.mxu0 %v607
    %744 = vmatpush1.bf16.msra.mxu0 %v606
    %745 = vmatprep.subr.bf16.mxu0 %v609
    %746 = vmatpush1.bf16.msra.mxu0 %v608
    %747 = vmatprep.subr.bf16.mxu0 %v611
    %748 = vmatpush1.bf16.msra.mxu0 %v610
    %749 = vmatprep.mubr.bf16.mxu0 %v279
    %750 = vmatmul.mubr.bf16.gmra.mrb[0].mxu0 %v278
    %v751 = vpop.f32.mrb[0].mxu0
    %v752 = vadd.f32 %v711, %v751
    %v753 = vpop.f32.mrb[0].mxu0
    %v754 = vadd.f32 %v713, %v753
    %v755 = vpop.f32.mrb[0].mxu0
    %v756 = vpop.f32.mrb[0].mxu0
    %757 = vdwg.mxu0
    %v758 = vmax.f32 %v752, 0.0
    %v759 = vmax.f32 %v754, 0.0
    %v760 = vpack.c.bf16 %v758, %v758
    %v761 = vpack.c.bf16 %v759, %v759
    %v762 = vld [vmem:[#allocation12] sm:$0xf]
    %v763 = vld [vmem:[#allocation12 + $0x4] sm:$0xf]
    %v764 = vld [vmem:[#allocation12 + $0x8] sm:$0xf]
    %v765 = vld [vmem:[#allocation12 + $0xc] sm:$0xf]
    %v766 = vld [vmem:[#allocation12 + $0x10] sm:$0xf]
    %v767 = vld [vmem:[#allocation12 + $0x14] sm:$0xf]
    %v768 = vld [vmem:[#allocation12 + $0x18] sm:$0xf]
    %v769 = vld [vmem:[#allocation12 + $0x1c] sm:$0xf]
    %v770 = vld [vmem:[#allocation12 + $0x20] sm:$0xf]
    %v771 = vld [vmem:[#allocation12 + $0x24] sm:$0xf]
    %v772 = vld [vmem:[#allocation12 + $0x28] sm:$0xf]
    %v773 = vld [vmem:[#allocation12 + $0x2c] sm:$0xf]
    %v774 = vld [vmem:[#allocation12 + $0x30] sm:$0xf]
    %v775 = vld [vmem:[#allocation12 + $0x34] sm:$0xf]
    %v776 = vld [vmem:[#allocation12 + $0x38] sm:$0xf]
    %v777 = vld [vmem:[#allocation12 + $0x3c] sm:$0xf]
    %v778 = vld [vmem:[#allocation12 + $0x40] sm:$0xf]
    %v779 = vld [vmem:[#allocation12 + $0x44] sm:$0xf]
    %v780 = vld [vmem:[#allocation12 + $0x48] sm:$0xf]
    %v781 = vld [vmem:[#allocation12 + $0x4c] sm:$0xf]
    %v782 = vld [vmem:[#allocation12 + $0x50] sm:$0xf]
    %v783 = vld [vmem:[#allocation12 + $0x54] sm:$0xf]
    %v784 = vld [vmem:[#allocation12 + $0x58] sm:$0xf]
    %v785 = vld [vmem:[#allocation12 + $0x5c] sm:$0xf]
    %v786 = vld [vmem:[#allocation12 + $0x60] sm:$0xf]
    %v787 = vld [vmem:[#allocation12 + $0x64] sm:$0xf]
    %v788 = vld [vmem:[#allocation12 + $0x68] sm:$0xf]
    %v789 = vld [vmem:[#allocation12 + $0x6c] sm:$0xf]
    %v790 = vld [vmem:[#allocation12 + $0x70] sm:$0xf]
    %v791 = vld [vmem:[#allocation12 + $0x74] sm:$0xf]
    %v792 = vld [vmem:[#allocation12 + $0x78] sm:$0xf]
    %v793 = vld [vmem:[#allocation12 + $0x7c] sm:$0xf]
    %v794 = vld [vmem:[%s7] sm:$0x1]
    %v796 = vlaneseq
    %v797 = vshrl.u32 %v796, 7
    %v798 = vsub.s32 0, %v797
    %v799 = vrot.slane %v794, %v798
    %v833 = vunpack.c.l.b16 %v762
    %v834 = vunpack.c.l.b16 %v763
    %v835 = vunpack.c.l.b16 %v764
    %v836 = vunpack.c.l.b16 %v765
    %v837 = vunpack.c.l.b16 %v766
    %v838 = vunpack.c.l.b16 %v767
    %v839 = vunpack.c.l.b16 %v768
    %v840 = vunpack.c.l.b16 %v769
    %v841 = vunpack.c.l.b16 %v770
    %v842 = vunpack.c.l.b16 %v771
    %v843 = vunpack.c.l.b16 %v772
    %v844 = vunpack.c.l.b16 %v773
    %v845 = vunpack.c.l.b16 %v774
    %v846 = vunpack.c.l.b16 %v775
    %v847 = vunpack.c.l.b16 %v776
    %v848 = vunpack.c.l.b16 %v777
    %v849 = vunpack.c.l.b16 %v778
    %v850 = vunpack.c.l.b16 %v779
    %v851 = vunpack.c.l.b16 %v780
    %v852 = vunpack.c.l.b16 %v781
    %v853 = vunpack.c.l.b16 %v782
    %v854 = vunpack.c.l.b16 %v783
    %v855 = vunpack.c.l.b16 %v784
    %v856 = vunpack.c.l.b16 %v785
    %v857 = vunpack.c.l.b16 %v786
    %v858 = vunpack.c.l.b16 %v787
    %v859 = vunpack.c.l.b16 %v788
    %v860 = vunpack.c.l.b16 %v789
    %v861 = vunpack.c.l.b16 %v790
    %v862 = vunpack.c.l.b16 %v791
    %v863 = vunpack.c.l.b16 %v792
    %v864 = vunpack.c.l.b16 %v793
    %v865 = vpack.c.b16 %v834, %v833
    %v866 = vpack.c.b16 %v836, %v835
    %v867 = vpack.c.b16 %v838, %v837
    %v868 = vpack.c.b16 %v840, %v839
    %v869 = vpack.c.b16 %v842, %v841
    %v870 = vpack.c.b16 %v844, %v843
    %v871 = vpack.c.b16 %v846, %v845
    %v872 = vpack.c.b16 %v848, %v847
    %v873 = vpack.c.b16 %v850, %v849
    %v874 = vpack.c.b16 %v852, %v851
    %v875 = vpack.c.b16 %v854, %v853
    %v876 = vpack.c.b16 %v856, %v855
    %v877 = vpack.c.b16 %v858, %v857
    %v878 = vpack.c.b16 %v860, %v859
    %v879 = vpack.c.b16 %v862, %v861
    %v880 = vpack.c.b16 %v864, %v863
    %897 = vmatprep.subr.bf16.mxu0 0
    %898 = vmatpush1.bf16.msra.mxu0 %v865
    %899 = vmatprep.subr.bf16.mxu0 0
    %900 = vmatpush1.bf16.msra.mxu0 %v866
    %901 = vmatprep.subr.bf16.mxu0 0
    %902 = vmatpush1.bf16.msra.mxu0 %v867
    %903 = vmatprep.subr.bf16.mxu0 0
    %904 = vmatpush1.bf16.msra.mxu0 %v868
    %905 = vmatprep.subr.bf16.mxu0 0
    %906 = vmatpush1.bf16.msra.mxu0 %v869
    %907 = vmatprep.subr.bf16.mxu0 0
    %908 = vmatpush1.bf16.msra.mxu0 %v870
    %909 = vmatprep.subr.bf16.mxu0 0
    %910 = vmatpush1.bf16.msra.mxu0 %v871
    %911 = vmatprep.subr.bf16.mxu0 0
    %912 = vmatpush1.bf16.msra.mxu0 %v872
    %913 = vmatprep.subr.bf16.mxu0 0
    %914 = vmatpush1.bf16.msra.mxu0 %v873
    %915 = vmatprep.subr.bf16.mxu0 0
    %916 = vmatpush1.bf16.msra.mxu0 %v874
    %917 = vmatprep.subr.bf16.mxu0 0
    %918 = vmatpush1.bf16.msra.mxu0 %v875
    %919 = vmatprep.subr.bf16.mxu0 0
    %920 = vmatpush1.bf16.msra.mxu0 %v876
    %921 = vmatprep.subr.bf16.mxu0 0
    %922 = vmatpush1.bf16.msra.mxu0 %v877
    %923 = vmatprep.subr.bf16.mxu0 0
    %924 = vmatpush1.bf16.msra.mxu0 %v878
    %925 = vmatprep.subr.bf16.mxu0 0
    %926 = vmatpush1.bf16.msra.mxu0 %v879
    %927 = vmatprep.subr.bf16.mxu0 0
    %928 = vmatpush1.bf16.msra.mxu0 %v880
    %929 = vmatprep.mubr.bf16.mxu0 %v761
    %930 = vmatmul.mubr.bf16.gmra.mrb[0].mxu0 %v760
    %v931 = vpop.f32.mrb[0].mxu0
    %v932 = vadd.f32 %v799, %v931
    %v933 = vpop.f32.mrb[0].mxu0
    %v934 = vpop.f32.mrb[0].mxu0
    %v935 = vpop.f32.mrb[0].mxu0
    %936 = vdwg.mxu0
    %v937 = vmax.f32 %v932, 0.0
    %v938 = vld [vmem:[%s8] sm:$0x1]
    %v940 = vlaneseq
    %v941 = vshrl.u32 %v940, 7
    %v942 = vsub.s32 0, %v941
    %v943 = vrot.slane %v938, %v942
    %v945 = vmul.f32 %v937, %v943
    %946 = vadd.xlane.f32.xlu0 %v945
    %v947 = vpop.xlane.xlu0 %946
    %v948 = vld [vmem:[#allocation3] sm:$0x1]
    %950 = vset.pattern.permute.xlu0 0
    %951 = vperm.xlu0 %950, %v948
    %v952 = vpop.permute.xlu0 %951
    %v954 = vlaneseq
    %v955 = vshrl.u32 %v954, 7
    %v956 = vsub.s32 0, %v955
    %v957 = vrot.slane %v952, %v956
    %v958 = vadd.f32 %v947, %v957
    %v960 = vlaneseq
    %v961 = vand.u32 %v960, 127
    %v962 = vlaneseq
    %v963 = vshrl.u32 %v962, 7
    %v964 = vsub.s32 %v961, %v963
    %v965 = vrot.slane %v958, %v964
    %vm967 = vcmask 57344
    %968 = vst.msk [vmem:[#allocation13] sm:$0x1] %vm967, %v965
    // Predicated region
    $region62: #{tpu_custom_call.1} parent=1 // pred_check
      _
    $region63: #{tpu_custom_call.1} parent=1 // pred_check_branch
      %970 = sbr.rel (0) target = $region65
    $region64: #{tpu_custom_call.1} parent=1 // pred_region
      %s972 = ssub.s32 16, 16
      %973 = vsyncadd [#allocation6], %s972
      %s975 = sshll.u32 [#allocation13], 4
      %s976 = int_to_ptr.vmem [resolvable:$true] %s975
      %978 = dma.vmem_to_hbm [thread:$0]  %s976, 16, %s10, [#allocation6]
    $region65: #{tpu_custom_call.1} parent=1 // pred_fallthru
      _
    // Predicated region
    $region66: #{tpu_custom_call.1} parent=1 // pred_check
      _
    $region67: #{tpu_custom_call.1} parent=1 // pred_check_branch
      %980 = sbr.rel (0) target = $region69
    $region68: #{tpu_custom_call.1} parent=1 // pred_region
      %981 = dma.done [#allocation6], 16
    $region69: #{tpu_custom_call.1} parent=1 // pred_fallthru
      _
    %982 = vsyncpa [#allocation5], 1
    %983 = vsyncpa [#allocation8], 1
    %984 = vsyncpa [#allocation11], 1
    %985 = vsyncpa [#allocation6], 1

</llo_original>
